<compile_context>
chip_gen: v6e
topology: v6e:2x2x1
jax: 0.10.0
libtpu: 0.0.40
codegen_flags: <defaults>
</compile_context>

<pallas_src>
from functools import lru_cache

import numpy as np
import jax
import jax.numpy as jnp
from jax.experimental import pallas as pl
from jax.experimental.pallas import tpu as pltpu


_KRON_MAX_HW = 512   # Kron dense-DFT path up to this H*W (review: ~256-512)


# ----------------------------- helpers ------------------------------------ #

def _round_up(a, b):
    return -(-a // b) * b


def _vmem_policy():
    """Generation-aware VMEM budget: v5e/v6e (128 MiB, 1 TC) vs v7x (64 MiB, 2 TC)."""
    cap = 64 << 20
    try:
        info = pltpu.get_tpu_info()
        cap = int(getattr(info, "vmem_capacity_bytes", 0)) or cap
    except Exception:
        pass
    if cap >= (128 << 20):
        # Single TensorCore, big VMEM: biggest blocks that fit, no step clamp.
        return {"budget": 80 << 20, "limit_cap": 100 << 20, "min_steps": 1}
    # v7x (64 MiB per TC) or unknown: leave headroom for Mosaic internal scratch
    # and keep >=4 blocks so the "parallel" batch axis balances across both TCs.
    return {"budget": 26 << 20, "limit_cap": 46 << 20, "min_steps": 4}


def _pick_tb(n, per_row_bytes, fixed_bytes, budget_bytes, max_tb, min_steps):
    """(H,W)-slices batched per grid step, VMEM-budgeted, 16-row aligned."""
    avail = max(budget_bytes - fixed_bytes, 8 * per_row_bytes)
    tb = int(avail // per_row_bytes)
    tb = min(tb, max_tb)
    if min_steps > 1 and n >= 64:                 # only on 2-TC parts (megacore)
        tb = min(tb, _round_up(-(-n // min_steps), 16))
    tb = min(tb, _round_up(n, 8))
    if tb >= 16:
        tb = (tb // 16) * 16                      # bf16 MXU feed: 16 rows / vreg
    return max(tb, 8)


def _const_spec(shape):
    """BlockSpec for a grid-invariant constant: single-buffered if supported."""
    imap = lambda i: (0,) * len(shape)
    try:
        return pl.BlockSpec(shape, imap, pipeline_mode=pl.Buffered(1))
    except Exception:
        return pl.BlockSpec(shape, imap)


def _split_bf16(m_f32):
    """hi/lo bf16 split of an f32 constant: m ~= hi + lo."""
    hi = m_f32.astype(jnp.bfloat16)
    lo = (m_f32 - hi.astype(jnp.float32)).astype(jnp.bfloat16)
    return hi, lo


def _split_a(a_f32):
    a_hi = a_f32.astype(jnp.bfloat16)
    a_lo = (a_f32 - a_hi.astype(jnp.float32)).astype(jnp.bfloat16)
    return a_hi, a_lo


def _mm3_pre(a_hi, a_lo, b_hi, b_lo):
    """Three native bf16 MXU passes with f32 accumulation (~bf16x3 precision)."""
    return (jnp.dot(a_hi, b_hi, preferred_element_type=jnp.float32)
            + jnp.dot(a_lo, b_hi, preferred_element_type=jnp.float32)
            + jnp.dot(a_hi, b_lo, preferred_element_type=jnp.float32))


def _mm3(a_f32, b_hi, b_lo):
    a_hi, a_lo = _split_a(a_f32)
    return _mm3_pre(a_hi, a_lo, b_hi, b_lo)


@lru_cache(maxsize=8)
def _kron_consts(h, w, scale):
    """cos / -sin Kronecker 2-D DFT matrices (H*W, H*W), bf16 hi/lo split."""
    ang_h = 2.0 * np.pi * np.outer(np.arange(h), np.arange(h)) / h
    ang_w = 2.0 * np.pi * np.outer(np.arange(w), np.arange(w)) / w
    ang = (ang_h[:, None, :, None] + ang_w[None, :, None, :]).reshape(h * w, h * w)
    mc = jnp.asarray(np.cos(ang) * scale, jnp.float32)
    ms = jnp.asarray(-np.sin(ang) * scale, jnp.float32)
    return (*_split_bf16(mc), *_split_bf16(ms))


@lru_cache(maxsize=8)
def _stage_consts(a, b, scale):
    """Stage DFT matrices [C|-S]: (A,2A) with norm scale folded in, (B,2B)."""
    def cmat(n, sc):
        k = np.arange(n)
        ang = 2.0 * np.pi * np.outer(k, k) / n
        m = np.concatenate([np.cos(ang), -np.sin(ang)], axis=1) * sc
        return _split_bf16(jnp.asarray(m, jnp.float32))
    fa_hi, fa_lo = cmat(a, scale)
    fb_hi, fb_lo = cmat(b, 1.0)
    return fa_hi, fa_lo, fb_hi, fb_lo


# ----------------------------- kernels ------------------------------------ #

def _fft2_kron_kernel(x_ref, mc_hi, mc_lo, ms_hi, ms_lo, yre_ref, yim_ref):
    # x_ref: (TB, H*W) f32; constants (H*W, H*W) bf16; outputs (TB, H*W) f32.
    a_hi, a_lo = _split_a(x_ref[...])
    yre_ref[...] = _mm3_pre(a_hi, a_lo, mc_hi[...], mc_lo[...])
    yim_ref[...] = _mm3_pre(a_hi, a_lo, ms_hi[...], ms_lo[...])


def _fft2_stage_compute(x_ref, fa_hi, fa_lo, fb_hi, fb_lo):
    # x_ref: (TB, A, B); fa = [C_A|-S_A]*scale (A, 2A); fb = [C_B|-S_B] (B, 2B).
    # A-transform first on the real input (one real transpose), B-transform last.
    tb, a, b = x_ref.shape
    xt = jnp.swapaxes(x_ref[...], 1, 2).reshape(tb * b, a)          # (tb*b, a)
    q = _mm3(xt, fa_hi[...], fa_lo[...]).reshape(tb, b, 2 * a)      # [T_re^T|T_im^T]
    qt = jnp.swapaxes(q, 1, 2).reshape(tb * 2 * a, b)               # (tb*2a, b)
    r = _mm3(qt, fb_hi[...], fb_lo[...]).reshape(tb, 2 * a, 2 * b)  # (tb, 2a, 2b)
    y_re = r[:, :a, :b] - r[:, a:, b:]
    y_im = r[:, a:, :b] + r[:, :a, b:]
    return y_re, y_im


def _fft2_stage_kernel_split(x_ref, fa_hi, fa_lo, fb_hi, fb_lo, yre_ref, yim_ref):
    y_re, y_im = _fft2_stage_compute(x_ref, fa_hi, fa_lo, fb_hi, fb_lo)
    yre_ref[...] = y_re
    yim_ref[...] = y_im


def _fft2_stage_kernel_slab(x_ref, fa_hi, fa_lo, fb_hi, fb_lo, y_ref):
    y_re, y_im = _fft2_stage_compute(x_ref, fa_hi, fa_lo, fb_hi, fb_lo)
    y_ref[...] = jnp.concatenate([y_re, y_im], axis=-1)


# ----------------------------- wrappers ------------------------------------ #

def _fft2_kron(xb, H, W, scale, pol):
    """Single-matmul Kronecker path for H*W <= _KRON_MAX_HW."""
    n = xb.shape[0]
    hw = H * W
    mc_hi, mc_lo, ms_hi, ms_lo = _kron_consts(H, W, float(scale))

    per_row = 40 * hw                 # dbl-buffered IO rows + bf16 splits + temps
    fixed = 8 * hw * hw               # 4 constant matrices, single-buffered
    tb = _pick_tb(n, per_row, fixed, pol["budget"], 2048, pol["min_steps"])
    n_pad = _round_up(n, tb)

    x2 = xb.reshape(n, hw)
    if n_pad != n:
        x2 = jnp.pad(x2, ((0, n_pad - n), (0, 0)))

    demand = fixed + tb * per_row + (6 << 20)
    vmem_limit = int(min(pol["limit_cap"], max(32 << 20, demand)))
    cost = pl.CostEstimate(flops=int(12 * n_pad * hw * hw), transcendentals=0,
                           bytes_accessed=int(12 * n_pad * hw + 8 * hw * hw))

    y_re, y_im = pl.pallas_call(
        _fft2_kron_kernel,
        out_shape=(jax.ShapeDtypeStruct((n_pad, hw), jnp.float32),
                   jax.ShapeDtypeStruct((n_pad, hw), jnp.float32)),
        grid=(n_pad // tb,),
        in_specs=[pl.BlockSpec((tb, hw), lambda i: (i, 0)),
                  _const_spec((hw, hw)), _const_spec((hw, hw)),
                  _const_spec((hw, hw)), _const_spec((hw, hw))],
        out_specs=(pl.BlockSpec((tb, hw), lambda i: (i, 0)),
                   pl.BlockSpec((tb, hw), lambda i: (i, 0))),
        compiler_params=pltpu.CompilerParams(
            dimension_semantics=("parallel",), vmem_limit_bytes=vmem_limit),
        cost_estimate=cost,
    )(x2, mc_hi, mc_lo, ms_hi, ms_lo)

    return y_re[:n].reshape(n, H, W), y_im[:n].reshape(n, H, W)


def _fft2_twostage(xb, H, W, scale, pol):
    """Two-stage (separable) path; the larger axis is put on lanes."""
    n = xb.shape[0]
    swap = (2 * W < 128) and (H > W)       # keep output stores lane-dense
    if swap:
        xin = jnp.swapaxes(xb, 1, 2)
        A, B = W, H
    else:
        xin = xb
        A, B = H, W

    fa_hi, fa_lo, fb_hi, fb_lo = _stage_consts(A, B, float(scale))

    per_row = 72 * A * B                   # live f32/bf16 intermediates per slice
    fixed = 8 * (A * A + B * B)            # single-buffered stage matrices
    tb = _pick_tb(n, per_row, fixed, pol["budget"], 256, pol["min_steps"])
    n_pad = _round_up(n, tb)
    if n_pad != n:
        xin = jnp.pad(xin, ((0, n_pad - n), (0, 0), (0, 0)))

    demand = fixed + tb * per_row + (6 << 20)
    vmem_limit = int(min(pol["limit_cap"], max(32 << 20, demand)))
    cost = pl.CostEstimate(flops=int(12 * n_pad * A * B * (A + B)),
                           transcendentals=0,
                           bytes_accessed=int(12 * n_pad * A * B
                                              + 8 * (A * A + B * B)))

    in_specs = [pl.BlockSpec((tb, A, B), lambda i: (i, 0, 0)),
                _const_spec((A, 2 * A)), _const_spec((A, 2 * A)),
                _const_spec((B, 2 * B)), _const_spec((B, 2 * B))]

    split = B >= 128                        # separate re/im outputs when lane-dense
    if split:
        out_shape = (jax.ShapeDtypeStruct((n_pad, A, B), jnp.float32),
                     jax.ShapeDtypeStruct((n_pad, A, B), jnp.float32))
        out_specs = (pl.BlockSpec((tb, A, B), lambda i: (i, 0, 0)),
                     pl.BlockSpec((tb, A, B), lambda i: (i, 0, 0)))
        kern = _fft2_stage_kernel_split
    else:
        out_shape = jax.ShapeDtypeStruct((n_pad, A, 2 * B), jnp.float32)
        out_specs = pl.BlockSpec((tb, A, 2 * B), lambda i: (i, 0, 0))
        kern = _fft2_stage_kernel_slab

    out = pl.pallas_call(
        kern, out_shape=out_shape, grid=(n_pad // tb,),
        in_specs=in_specs, out_specs=out_specs,
        compiler_params=pltpu.CompilerParams(
            dimension_semantics=("parallel",), vmem_limit_bytes=vmem_limit),
        cost_estimate=cost,
    )(xin, fa_hi, fa_lo, fb_hi, fb_lo)

    if split:
        y_re, y_im = out[0][:n], out[1][:n]
    else:
        y_re, y_im = out[:n, :, :B], out[:n, :, B:]

    if swap:
        y_re = jnp.swapaxes(y_re, 1, 2)
        y_im = jnp.swapaxes(y_im, 1, 2)
    return y_re, y_im


def fft_forward(x, dim=(-2, -1), norm='backward'):
    """Pallas equivalent of FFT(dim, norm).forward(x) for real x (complex64 out)."""
    nd = x.ndim
    assert len(dim) == 2, "kernel implements the module's 2-D transform"
    d = tuple(a % nd for a in dim)
    if d != (nd - 2, nd - 1):
        perm = [i for i in range(nd) if i not in d] + list(d)
        inv = tuple(int(i) for i in np.argsort(perm))
        y = fft_forward(jnp.transpose(x, perm), dim=(-2, -1), norm=norm)
        return jnp.transpose(y, inv)

    lead = x.shape[:-2]
    H, W = int(x.shape[-2]), int(x.shape[-1])
    n = int(np.prod(lead)) if lead else 1
    xb = x.reshape(n, H, W).astype(jnp.float32)

    # torch.fft.fftn norm semantics; scale folded into the DFT matrices.
    scale = {'backward': 1.0,
             'forward': 1.0 / (H * W),
             'ortho': 1.0 / float(np.sqrt(H * W))}[norm]

    pol = _vmem_policy()
    if H * W <= _KRON_MAX_HW:
        y_re, y_im = _fft2_kron(xb, H, W, scale, pol)
    else:
        y_re, y_im = _fft2_twostage(xb, H, W, scale, pol)

    y = jax.lax.complex(y_re, y_im)        # complex assembled outside Pallas
    return y.reshape(*lead, H, W)


if __name__ == "__main__":
    key = jax.random.PRNGKey(0)

    # Kron path (H*W = 256 <= 512).
    x = jax.random.normal(key, (2, 4, 16, 16), dtype=jnp.float32)
    y = jax.block_until_ready(fft_forward(x, dim=(-2, -1), norm='backward'))
    y_ref = jnp.fft.fftn(x, axes=(-2, -1), norm='backward')
    err = float(jnp.max(jnp.abs(y - y_ref)))
    mag = float(jnp.max(jnp.abs(y_ref)))
    assert err <= 1e-3 * max(mag, 1.0), f"kron path: max abs error {err} too large"

    # Two-stage path (H*W = 1024 > 512).
    x2 = jax.random.normal(jax.random.PRNGKey(1), (2, 3, 32, 32), dtype=jnp.float32)
    y2 = jax.block_until_ready(fft_forward(x2, dim=(-2, -1), norm='ortho'))
    y2_ref = jnp.fft.fftn(x2, axes=(-2, -1), norm='ortho')
    err2 = float(jnp.max(jnp.abs(y2 - y2_ref)))
    mag2 = float(jnp.max(jnp.abs(y2_ref)))
    assert err2 <= 1e-3 * max(mag2, 1.0), f"two-stage path: max abs error {err2} too large"

    print("KERNEL_OK")
</pallas_src>

<mosaic_0001>
module attributes {stable_mosaic.version = 11 : i64} {
  func.func @_fft2_kron_kernel(%arg0: i32, %arg1: memref<8x256xf32, #tpu.memory_space<vmem>>, %arg2: memref<256x256xbf16, #tpu.memory_space<vmem>>, %arg3: memref<256x256xbf16, #tpu.memory_space<vmem>>, %arg4: memref<256x256xbf16, #tpu.memory_space<vmem>>, %arg5: memref<256x256xbf16, #tpu.memory_space<vmem>>, %arg6: memref<8x256xf32, #tpu.memory_space<vmem>>, %arg7: memref<8x256xf32, #tpu.memory_space<vmem>>) attributes {dimension_semantics = [#tpu.dimension_semantics<parallel>], iteration_bounds = array<i64: 1>, scalar_prefetch = 0 : i64, scratch_operands = 0 : i64, tpu.core_type = #tpu.core_type<tc>, window_params = [{transform_indices = @transform_0, window_bounds = array<i64: 8, 256>}, {pipeline_mode = #tpu.pipeline_mode<synchronous>, transform_indices = @transform_1, window_bounds = array<i64: 256, 256>}, {pipeline_mode = #tpu.pipeline_mode<synchronous>, transform_indices = @transform_2, window_bounds = array<i64: 256, 256>}, {pipeline_mode = #tpu.pipeline_mode<synchronous>, transform_indices = @transform_3, window_bounds = array<i64: 256, 256>}, {pipeline_mode = #tpu.pipeline_mode<synchronous>, transform_indices = @transform_4, window_bounds = array<i64: 256, 256>}, {transform_indices = @transform_5, window_bounds = array<i64: 8, 256>}, {transform_indices = @transform_6, window_bounds = array<i64: 8, 256>}]} {
    %c0 = arith.constant 0 : index
    %c0_0 = arith.constant 0 : index
    %0 = vector.load %arg1[%c0, %c0_0] : memref<8x256xf32, #tpu.memory_space<vmem>>, vector<8x256xf32>
    %1 = arith.truncf %0 : vector<8x256xf32> to vector<8x256xbf16>
    %2 = arith.extf %1 : vector<8x256xbf16> to vector<8x256xf32>
    %3 = arith.subf %0, %2 : vector<8x256xf32>
    %4 = arith.truncf %3 : vector<8x256xf32> to vector<8x256xbf16>
    %c0_1 = arith.constant 0 : index
    %c0_2 = arith.constant 0 : index
    %5 = vector.load %arg2[%c0_1, %c0_2] : memref<256x256xbf16, #tpu.memory_space<vmem>>, vector<256x256xbf16>
    %c0_3 = arith.constant 0 : index
    %c0_4 = arith.constant 0 : index
    %6 = vector.load %arg3[%c0_3, %c0_4] : memref<256x256xbf16, #tpu.memory_space<vmem>>, vector<256x256xbf16>
    %cst = arith.constant dense<0.000000e+00> : vector<8x256xf32>
    %7 = tpu.matmul %1, %5, %cst {dimension_numbers = #tpu.dot_dimension_numbers<[1], [0], [0], [1], [0, 0, 1, 1], [], []>} : vector<8x256xbf16>, vector<256x256xbf16>, vector<8x256xf32> -> vector<8x256xf32>
    %cst_5 = arith.constant dense<0.000000e+00> : vector<8x256xf32>
    %8 = tpu.matmul %4, %5, %cst_5 {dimension_numbers = #tpu.dot_dimension_numbers<[1], [0], [0], [1], [0, 0, 1, 1], [], []>} : vector<8x256xbf16>, vector<256x256xbf16>, vector<8x256xf32> -> vector<8x256xf32>
    %9 = arith.addf %7, %8 : vector<8x256xf32>
    %cst_6 = arith.constant dense<0.000000e+00> : vector<8x256xf32>
    %10 = tpu.matmul %1, %6, %cst_6 {dimension_numbers = #tpu.dot_dimension_numbers<[1], [0], [0], [1], [0, 0, 1, 1], [], []>} : vector<8x256xbf16>, vector<256x256xbf16>, vector<8x256xf32> -> vector<8x256xf32>
    %11 = arith.addf %9, %10 : vector<8x256xf32>
    %c0_7 = arith.constant 0 : index
    %c0_8 = arith.constant 0 : index
    %12 = vector.load %arg6[%c0_7, %c0_8] : memref<8x256xf32, #tpu.memory_space<vmem>>, vector<8x256xf32>
    tpu.vector_store %arg6[%c0_7, %c0_8], %11 {strides = array<i32>} : memref<8x256xf32, #tpu.memory_space<vmem>>, vector<8x256xf32>,
    %c0_9 = arith.constant 0 : index
    %c0_10 = arith.constant 0 : index
    %13 = vector.load %arg4[%c0_9, %c0_10] : memref<256x256xbf16, #tpu.memory_space<vmem>>, vector<256x256xbf16>
    %c0_11 = arith.constant 0 : index
    %c0_12 = arith.constant 0 : index
    %14 = vector.load %arg5[%c0_11, %c0_12] : memref<256x256xbf16, #tpu.memory_space<vmem>>, vector<256x256xbf16>
    %cst_13 = arith.constant dense<0.000000e+00> : vector<8x256xf32>
    %15 = tpu.matmul %1, %13, %cst_13 {dimension_numbers = #tpu.dot_dimension_numbers<[1], [0], [0], [1], [0, 0, 1, 1], [], []>} : vector<8x256xbf16>, vector<256x256xbf16>, vector<8x256xf32> -> vector<8x256xf32>
    %cst_14 = arith.constant dense<0.000000e+00> : vector<8x256xf32>
    %16 = tpu.matmul %4, %13, %cst_14 {dimension_numbers = #tpu.dot_dimension_numbers<[1], [0], [0], [1], [0, 0, 1, 1], [], []>} : vector<8x256xbf16>, vector<256x256xbf16>, vector<8x256xf32> -> vector<8x256xf32>
    %17 = arith.addf %15, %16 : vector<8x256xf32>
    %cst_15 = arith.constant dense<0.000000e+00> : vector<8x256xf32>
    %18 = tpu.matmul %1, %14, %cst_15 {dimension_numbers = #tpu.dot_dimension_numbers<[1], [0], [0], [1], [0, 0, 1, 1], [], []>} : vector<8x256xbf16>, vector<256x256xbf16>, vector<8x256xf32> -> vector<8x256xf32>
    %19 = arith.addf %17, %18 : vector<8x256xf32>
    %c0_16 = arith.constant 0 : index
    %c0_17 = arith.constant 0 : index
    %20 = vector.load %arg7[%c0_16, %c0_17] : memref<8x256xf32, #tpu.memory_space<vmem>>, vector<8x256xf32>
    tpu.vector_store %arg7[%c0_16, %c0_17], %19 {strides = array<i32>} : memref<8x256xf32, #tpu.memory_space<vmem>>, vector<8x256xf32>,
    return
  }
  func.func @transform_0(%arg0: i32) -> (i32, i32) {
    %c0_i32 = arith.constant 0 : i32
    %c0_i32_0 = arith.constant 0 : i32
    return %arg0, %c0_i32 : i32, i32
  }
  func.func @transform_1(%arg0: i32) -> (i32, i32) {
    %c0_i32 = arith.constant 0 : i32
    %c0_i32_0 = arith.constant 0 : i32
    %c0_i32_1 = arith.constant 0 : i32
    return %c0_i32, %c0_i32_0 : i32, i32
  }
  func.func @transform_2(%arg0: i32) -> (i32, i32) {
    %c0_i32 = arith.constant 0 : i32
    %c0_i32_0 = arith.constant 0 : i32
    %c0_i32_1 = arith.constant 0 : i32
    return %c0_i32, %c0_i32_0 : i32, i32
  }
  func.func @transform_3(%arg0: i32) -> (i32, i32) {
    %c0_i32 = arith.constant 0 : i32
    %c0_i32_0 = arith.constant 0 : i32
    %c0_i32_1 = arith.constant 0 : i32
    return %c0_i32, %c0_i32_0 : i32, i32
  }
  func.func @transform_4(%arg0: i32) -> (i32, i32) {
    %c0_i32 = arith.constant 0 : i32
    %c0_i32_0 = arith.constant 0 : i32
    %c0_i32_1 = arith.constant 0 : i32
    return %c0_i32, %c0_i32_0 : i32, i32
  }
  func.func @transform_5(%arg0: i32) -> (i32, i32) {
    %c0_i32 = arith.constant 0 : i32
    %c0_i32_0 = arith.constant 0 : i32
    return %arg0, %c0_i32 : i32, i32
  }
  func.func @transform_6(%arg0: i32) -> (i32, i32) {
    %c0_i32 = arith.constant 0 : i32
    %c0_i32_0 = arith.constant 0 : i32
    return %arg0, %c0_i32 : i32, i32
  }
}

</mosaic_0001>

<llo_original>
// kernel: tpu_custom_call.1
$region0: #{tpu_custom_call.1}
  #allocation0 [shape = 'u32[]', space=smem, size = 0x4, offset = 0x4, fixed_abs, tag = 'smem constant byte address 0x4 - core index']
  #allocation1 [shape = 'u32[144,128]{1,0:T(1,128)}', space=vmem, size = 0x12000, scoped, tag = 'internal scratch']
  %s0 = inlined_call_operand.hbm [shape: f32[8,256], index: 0, kind: input, shape index: {}]
  %s1 = inlined_call_operand.hbm [shape: bf16[256,256], index: 1, kind: input, shape index: {}]
  %s2 = inlined_call_operand.hbm [shape: bf16[256,256], index: 2, kind: input, shape index: {}]
  %s3 = inlined_call_operand.hbm [shape: bf16[256,256], index: 3, kind: input, shape index: {}]
  %s4 = inlined_call_operand.hbm [shape: bf16[256,256], index: 4, kind: input, shape index: {}]
  %s5 = inlined_call_operand.hbm [shape: f32[8,256], index: 5, kind: output, shape index: {0}]
  %s6 = inlined_call_operand.hbm [shape: f32[8,256], index: 6, kind: output, shape index: {1}]
  %7 = xla_tuple %s5, %s6
  %s8 = sld [smem:[#allocation0]]
  $region58: #{tpu_custom_call.1} parent=0
    _
  %s10 = ssub.s32 1, %s8
  %s11 = scalar_select 0, %s10, %s8
  $region1: #{tpu_custom_call.1} parent=0
    #allocation2 [shape = 'u8[8192]{0}', space=vmem, size = 0x2000, scoped, tag = 'input window, operand 0, single buffered']
    #allocation3 [shape = 's32[1]{0}', space=sflag, size = 0x4, scoped, tag = 'scoped memory for tpu_custom_call.1']
    #allocation4 [shape = 's32[1]{0}', space=sflag, size = 0x4, scoped, tag = 'scoped memory for tpu_custom_call.1']
    #allocation5 [shape = 'u8[131072]{0}', space=vmem, size = 0x20000, scoped, tag = 'input window, operand 1, single buffered']
    #allocation6 [shape = 's32[1]{0}', space=sflag, size = 0x4, scoped, tag = 'scoped memory for tpu_custom_call.1']
    #allocation7 [shape = 'u8[131072]{0}', space=vmem, size = 0x20000, scoped, tag = 'input window, operand 2, single buffered']
    #allocation8 [shape = 'u8[131072]{0}', space=vmem, size = 0x20000, scoped, tag = 'input window, operand 3, single buffered']
    #allocation9 [shape = 's32[1]{0}', space=sflag, size = 0x4, scoped, tag = 'scoped memory for tpu_custom_call.1']
    #allocation10 [shape = 'u8[131072]{0}', space=vmem, size = 0x20000, scoped, tag = 'input window, operand 4, single buffered']
    #allocation11 [shape = 'u8[8192]{0}', space=vmem, size = 0x2000, scoped, tag = 'output window, operand 0, single buffered']
    #allocation12 [shape = 'u8[8192]{0}', space=vmem, size = 0x2000, scoped, tag = 'output window, operand 1, single buffered']
    #allocation13 [shape = 's32[1]{0}', space=sflag, size = 0x4, scoped, tag = 'scoped memory for tpu_custom_call.1']
    %12 = vsyncpa [#allocation3], 0
    %13 = vsyncpa [#allocation6], 0
    %14 = vsyncpa [#allocation9], 0
    %15 = vsyncpa [#allocation4], 0
    %16 = vsyncpa [#allocation13], 0
    // Predicated region
    $region2: #{tpu_custom_call.1} parent=1 // pred_check
      _
    $region3: #{tpu_custom_call.1} parent=1 // pred_check_branch
      %18 = sbr.rel (0) target = $region5
    $region4: #{tpu_custom_call.1} parent=1 // pred_region
      %s20 = ssub.s32 256, 256
      %21 = vsyncadd [#allocation3], %s20
      %s23 = sshll.u32 [#allocation2], 4
      %s24 = int_to_ptr.vmem [resolvable:$true] %s23
      %26 = dma.hbm_to_vmem [thread:$0]  %s0, 256, %s24, [#allocation3]
    $region5: #{tpu_custom_call.1} parent=1 // pred_fallthru
      _
    // Predicated region
    $region6: #{tpu_custom_call.1} parent=1 // pred_check
      _
    $region7: #{tpu_custom_call.1} parent=1 // pred_check_branch
      %28 = sbr.rel (0) target = $region9
    $region8: #{tpu_custom_call.1} parent=1 // pred_region
      %s30 = ssub.s32 4096, 4096
      %31 = vsyncadd [#allocation6], %s30
      %s32 = sshll.u32 [#allocation5], 4
      %s33 = int_to_ptr.vmem [resolvable:$true] %s32
      %38 = dma.hbm_to_vmem [thread:$0]  %s1, 4096, %s33, [#allocation6], 128, 128, 8
    $region9: #{tpu_custom_call.1} parent=1 // pred_fallthru
      _
    // Predicated region
    $region10: #{tpu_custom_call.1} parent=1 // pred_check
      _
    $region11: #{tpu_custom_call.1} parent=1 // pred_check_branch
      %40 = sbr.rel (0) target = $region13
    $region12: #{tpu_custom_call.1} parent=1 // pred_region
      %s42 = ssub.s32 4096, 4096
      %43 = vsyncadd [#allocation6], %s42
      %s44 = sshll.u32 [#allocation7], 4
      %s45 = int_to_ptr.vmem [resolvable:$true] %s44
      %50 = dma.hbm_to_vmem [thread:$0]  %s2, 4096, %s45, [#allocation6], 128, 128, 8
    $region13: #{tpu_custom_call.1} parent=1 // pred_fallthru
      _
    // Predicated region
    $region14: #{tpu_custom_call.1} parent=1 // pred_check
      _
    $region15: #{tpu_custom_call.1} parent=1 // pred_check_branch
      %52 = sbr.rel (0) target = $region17
    $region16: #{tpu_custom_call.1} parent=1 // pred_region
      %s54 = ssub.s32 4096, 4096
      %55 = vsyncadd [#allocation9], %s54
      %s56 = sshll.u32 [#allocation8], 4
      %s57 = int_to_ptr.vmem [resolvable:$true] %s56
      %62 = dma.hbm_to_vmem [thread:$0]  %s3, 4096, %s57, [#allocation9], 128, 128, 8
    $region17: #{tpu_custom_call.1} parent=1 // pred_fallthru
      _
    // Predicated region
    $region18: #{tpu_custom_call.1} parent=1 // pred_check
      _
    $region19: #{tpu_custom_call.1} parent=1 // pred_check_branch
      %64 = sbr.rel (0) target = $region21
    $region20: #{tpu_custom_call.1} parent=1 // pred_region
      %s66 = ssub.s32 4096, 4096
      %67 = vsyncadd [#allocation9], %s66
      %s68 = sshll.u32 [#allocation10], 4
      %s69 = int_to_ptr.vmem [resolvable:$true] %s68
      %74 = dma.hbm_to_vmem [thread:$0]  %s4, 4096, %s69, [#allocation9], 128, 128, 8
    $region21: #{tpu_custom_call.1} parent=1 // pred_fallthru
      _
    // Predicated region
    $region22: #{tpu_custom_call.1} parent=1 // pred_check
      _
    $region23: #{tpu_custom_call.1} parent=1 // pred_check_branch
      %76 = sbr.rel (0) target = $region25
    $region24: #{tpu_custom_call.1} parent=1 // pred_region
      %77 = dma.done [#allocation3], 256
    $region25: #{tpu_custom_call.1} parent=1 // pred_fallthru
      _
    // Predicated region
    $region26: #{tpu_custom_call.1} parent=1 // pred_check
      _
    $region27: #{tpu_custom_call.1} parent=1 // pred_check_branch
      %79 = sbr.rel (0) target = $region29
    $region28: #{tpu_custom_call.1} parent=1 // pred_region
      %80 = dma.done [#allocation6], 4096
    $region29: #{tpu_custom_call.1} parent=1 // pred_fallthru
      _
    // Predicated region
    $region30: #{tpu_custom_call.1} parent=1 // pred_check
      _
    $region31: #{tpu_custom_call.1} parent=1 // pred_check_branch
      %82 = sbr.rel (0) target = $region33
    $region32: #{tpu_custom_call.1} parent=1 // pred_region
      %83 = dma.done [#allocation6], 4096
    $region33: #{tpu_custom_call.1} parent=1 // pred_fallthru
      _
    // Predicated region
    $region34: #{tpu_custom_call.1} parent=1 // pred_check
      _
    $region35: #{tpu_custom_call.1} parent=1 // pred_check_branch
      %85 = sbr.rel (0) target = $region37
    $region36: #{tpu_custom_call.1} parent=1 // pred_region
      %86 = dma.done [#allocation9], 4096
    $region37: #{tpu_custom_call.1} parent=1 // pred_fallthru
      _
    // Predicated region
    $region38: #{tpu_custom_call.1} parent=1 // pred_check
      _
    $region39: #{tpu_custom_call.1} parent=1 // pred_check_branch
      %88 = sbr.rel (0) target = $region41
    $region40: #{tpu_custom_call.1} parent=1 // pred_region
      %89 = dma.done [#allocation9], 4096
    $region41: #{tpu_custom_call.1} parent=1 // pred_fallthru
      _
    %v90 = vld [vmem:[#allocation2] sm:$0xff]
    %v91 = vld [vmem:[#allocation2 + $0x8] sm:$0xff]
    %v92 = vpack.c.bf16 %v90, %v90
    %v93 = vpack.c.bf16 %v91, %v91
    %v94 = vunpack.c.l.bf16 %v92
    %v95 = vunpack.c.l.bf16 %v93
    %v96 = vsub.f32 %v90, %v94
    %v97 = vsub.f32 %v91, %v95
    %v98 = vpack.c.bf16 %v96, %v96
    %v99 = vpack.c.bf16 %v97, %v97
    %v100 = vld [vmem:[#allocation5] sm:$0xff]
    %v101 = vld [vmem:[#allocation5 + $0x8] sm:$0xff]
    %v102 = vld [vmem:[#allocation5 + $0x10] sm:$0xff]
    %v103 = vld [vmem:[#allocation5 + $0x18] sm:$0xff]
    %v104 = vld [vmem:[#allocation5 + $0x20] sm:$0xff]
    %v105 = vld [vmem:[#allocation5 + $0x28] sm:$0xff]
    %v106 = vld [vmem:[#allocation5 + $0x30] sm:$0xff]
    %v107 = vld [vmem:[#allocation5 + $0x38] sm:$0xff]
    %v108 = vld [vmem:[#allocation5 + $0x40] sm:$0xff]
    %v109 = vld [vmem:[#allocation5 + $0x48] sm:$0xff]
    %v110 = vld [vmem:[#allocation5 + $0x50] sm:$0xff]
    %v111 = vld [vmem:[#allocation5 + $0x58] sm:$0xff]
    %v112 = vld [vmem:[#allocation5 + $0x60] sm:$0xff]
    %v113 = vld [vmem:[#allocation5 + $0x68] sm:$0xff]
    %v114 = vld [vmem:[#allocation5 + $0x70] sm:$0xff]
    %v115 = vld [vmem:[#allocation5 + $0x78] sm:$0xff]
    %v116 = vld [vmem:[#allocation5 + $0x80] sm:$0xff]
    %v117 = vld [vmem:[#allocation5 + $0x88] sm:$0xff]
    %v118 = vld [vmem:[#allocation5 + $0x90] sm:$0xff]
    %v119 = vld [vmem:[#allocation5 + $0x98] sm:$0xff]
    %v120 = vld [vmem:[#allocation5 + $0xa0] sm:$0xff]
    %v121 = vld [vmem:[#allocation5 + $0xa8] sm:$0xff]
    %v122 = vld [vmem:[#allocation5 + $0xb0] sm:$0xff]
    %v123 = vld [vmem:[#allocation5 + $0xb8] sm:$0xff]
    %v124 = vld [vmem:[#allocation5 + $0xc0] sm:$0xff]
    %v125 = vld [vmem:[#allocation5 + $0xc8] sm:$0xff]
    %v126 = vld [vmem:[#allocation5 + $0xd0] sm:$0xff]
    %v127 = vld [vmem:[#allocation5 + $0xd8] sm:$0xff]
    %v128 = vld [vmem:[#allocation5 + $0xe0] sm:$0xff]
    %v129 = vld [vmem:[#allocation5 + $0xe8] sm:$0xff]
    %v130 = vld [vmem:[#allocation5 + $0xf0] sm:$0xff]
    %v131 = vld [vmem:[#allocation5 + $0xf8] sm:$0xff]
    %v132 = vld [vmem:[#allocation7] sm:$0xff]
    %v133 = vld [vmem:[#allocation7 + $0x8] sm:$0xff]
    %v134 = vld [vmem:[#allocation7 + $0x10] sm:$0xff]
    %v135 = vld [vmem:[#allocation7 + $0x18] sm:$0xff]
    %v136 = vld [vmem:[#allocation7 + $0x20] sm:$0xff]
    %v137 = vld [vmem:[#allocation7 + $0x28] sm:$0xff]
    %v138 = vld [vmem:[#allocation7 + $0x30] sm:$0xff]
    %v139 = vld [vmem:[#allocation7 + $0x38] sm:$0xff]
    %v140 = vld [vmem:[#allocation7 + $0x40] sm:$0xff]
    %v141 = vld [vmem:[#allocation7 + $0x48] sm:$0xff]
    %v142 = vld [vmem:[#allocation7 + $0x50] sm:$0xff]
    %v143 = vld [vmem:[#allocation7 + $0x58] sm:$0xff]
    %v144 = vld [vmem:[#allocation7 + $0x60] sm:$0xff]
    %v145 = vld [vmem:[#allocation7 + $0x68] sm:$0xff]
    %v146 = vld [vmem:[#allocation7 + $0x70] sm:$0xff]
    %v147 = vld [vmem:[#allocation7 + $0x78] sm:$0xff]
    %v148 = vld [vmem:[#allocation7 + $0x80] sm:$0xff]
    %v149 = vld [vmem:[#allocation7 + $0x88] sm:$0xff]
    %v150 = vld [vmem:[#allocation7 + $0x90] sm:$0xff]
    %v151 = vld [vmem:[#allocation7 + $0x98] sm:$0xff]
    %v152 = vld [vmem:[#allocation7 + $0xa0] sm:$0xff]
    %v153 = vld [vmem:[#allocation7 + $0xa8] sm:$0xff]
    %v154 = vld [vmem:[#allocation7 + $0xb0] sm:$0xff]
    %v155 = vld [vmem:[#allocation7 + $0xb8] sm:$0xff]
    %v156 = vld [vmem:[#allocation7 + $0xc0] sm:$0xff]
    %v157 = vld [vmem:[#allocation7 + $0xc8] sm:$0xff]
    %v158 = vld [vmem:[#allocation7 + $0xd0] sm:$0xff]
    %v159 = vld [vmem:[#allocation7 + $0xd8] sm:$0xff]
    %v160 = vld [vmem:[#allocation7 + $0xe0] sm:$0xff]
    %v161 = vld [vmem:[#allocation7 + $0xe8] sm:$0xff]
    %v162 = vld [vmem:[#allocation7 + $0xf0] sm:$0xff]
    %v163 = vld [vmem:[#allocation7 + $0xf8] sm:$0xff]
    %v196 = vunpack.c.l.b16 %v100
    %v197 = vunpack.c.h.b16 %v100
    %v198 = vunpack.c.l.b16 %v101
    %v199 = vunpack.c.h.b16 %v101
    %v200 = vunpack.c.l.b16 %v102
    %v201 = vunpack.c.h.b16 %v102
    %v202 = vunpack.c.l.b16 %v103
    %v203 = vunpack.c.h.b16 %v103
    %v204 = vunpack.c.l.b16 %v104
    %v205 = vunpack.c.h.b16 %v104
    %v206 = vunpack.c.l.b16 %v105
    %v207 = vunpack.c.h.b16 %v105
    %v208 = vunpack.c.l.b16 %v106
    %v209 = vunpack.c.h.b16 %v106
    %v210 = vunpack.c.l.b16 %v107
    %v211 = vunpack.c.h.b16 %v107
    %v212 = vunpack.c.l.b16 %v108
    %v213 = vunpack.c.h.b16 %v108
    %v214 = vunpack.c.l.b16 %v109
    %v215 = vunpack.c.h.b16 %v109
    %v216 = vunpack.c.l.b16 %v110
    %v217 = vunpack.c.h.b16 %v110
    %v218 = vunpack.c.l.b16 %v111
    %v219 = vunpack.c.h.b16 %v111
    %v220 = vunpack.c.l.b16 %v112
    %v221 = vunpack.c.h.b16 %v112
    %v222 = vunpack.c.l.b16 %v113
    %v223 = vunpack.c.h.b16 %v113
    %v224 = vunpack.c.l.b16 %v114
    %v225 = vunpack.c.h.b16 %v114
    %v226 = vunpack.c.l.b16 %v115
    %v227 = vunpack.c.h.b16 %v115
    %v228 = vunpack.c.l.b16 %v116
    %v229 = vunpack.c.h.b16 %v116
    %v230 = vunpack.c.l.b16 %v117
    %v231 = vunpack.c.h.b16 %v117
    %v232 = vunpack.c.l.b16 %v118
    %v233 = vunpack.c.h.b16 %v118
    %v234 = vunpack.c.l.b16 %v119
    %v235 = vunpack.c.h.b16 %v119
    %v236 = vunpack.c.l.b16 %v120
    %v237 = vunpack.c.h.b16 %v120
    %v238 = vunpack.c.l.b16 %v121
    %v239 = vunpack.c.h.b16 %v121
    %v240 = vunpack.c.l.b16 %v122
    %v241 = vunpack.c.h.b16 %v122
    %v242 = vunpack.c.l.b16 %v123
    %v243 = vunpack.c.h.b16 %v123
    %v244 = vunpack.c.l.b16 %v124
    %v245 = vunpack.c.h.b16 %v124
    %v246 = vunpack.c.l.b16 %v125
    %v247 = vunpack.c.h.b16 %v125
    %v248 = vunpack.c.l.b16 %v126
    %v249 = vunpack.c.h.b16 %v126
    %v250 = vunpack.c.l.b16 %v127
    %v251 = vunpack.c.h.b16 %v127
    %v252 = vunpack.c.l.b16 %v128
    %v253 = vunpack.c.h.b16 %v128
    %v254 = vunpack.c.l.b16 %v129
    %v255 = vunpack.c.h.b16 %v129
    %v256 = vunpack.c.l.b16 %v130
    %v257 = vunpack.c.h.b16 %v130
    %v258 = vunpack.c.l.b16 %v131
    %v259 = vunpack.c.h.b16 %v131
    %v260 = vpack.c.b16 %v198, %v196
    %v261 = vpack.c.b16 %v199, %v197
    %v262 = vpack.c.b16 %v202, %v200
    %v263 = vpack.c.b16 %v203, %v201
    %v264 = vpack.c.b16 %v206, %v204
    %v265 = vpack.c.b16 %v207, %v205
    %v266 = vpack.c.b16 %v210, %v208
    %v267 = vpack.c.b16 %v211, %v209
    %v268 = vpack.c.b16 %v214, %v212
    %v269 = vpack.c.b16 %v215, %v213
    %v270 = vpack.c.b16 %v218, %v216
    %v271 = vpack.c.b16 %v219, %v217
    %v272 = vpack.c.b16 %v222, %v220
    %v273 = vpack.c.b16 %v223, %v221
    %v274 = vpack.c.b16 %v226, %v224
    %v275 = vpack.c.b16 %v227, %v225
    %v276 = vpack.c.b16 %v230, %v228
    %v277 = vpack.c.b16 %v231, %v229
    %v278 = vpack.c.b16 %v234, %v232
    %v279 = vpack.c.b16 %v235, %v233
    %v280 = vpack.c.b16 %v238, %v236
    %v281 = vpack.c.b16 %v239, %v237
    %v282 = vpack.c.b16 %v242, %v240
    %v283 = vpack.c.b16 %v243, %v241
    %v284 = vpack.c.b16 %v246, %v244
    %v285 = vpack.c.b16 %v247, %v245
    %v286 = vpack.c.b16 %v250, %v248
    %v287 = vpack.c.b16 %v251, %v249
    %v288 = vpack.c.b16 %v254, %v252
    %v289 = vpack.c.b16 %v255, %v253
    %v290 = vpack.c.b16 %v258, %v256
    %v291 = vpack.c.b16 %v259, %v257
    %324 = vmatprep.subr.bf16.mxu0 %v275
    %325 = vmatpush1.bf16.msra.mxu0 %v274
    %326 = vmatprep.subr.bf16.mxu0 %v273
    %327 = vmatpush1.bf16.msra.mxu0 %v272
    %328 = vmatprep.subr.bf16.mxu0 %v271
    %329 = vmatpush1.bf16.msra.mxu0 %v270
    %330 = vmatprep.subr.bf16.mxu0 %v269
    %331 = vmatpush1.bf16.msra.mxu0 %v268
    %332 = vmatprep.subr.bf16.mxu0 %v267
    %333 = vmatpush1.bf16.msra.mxu0 %v266
    %334 = vmatprep.subr.bf16.mxu0 %v265
    %335 = vmatpush1.bf16.msra.mxu0 %v264
    %336 = vmatprep.subr.bf16.mxu0 %v263
    %337 = vmatpush1.bf16.msra.mxu0 %v262
    %338 = vmatprep.subr.bf16.mxu0 %v261
    %339 = vmatpush1.bf16.msra.mxu0 %v260
    %340 = vmatprep.subr.bf16.mxu0 %v291
    %341 = vmatpush2.bf16.msra.mxu0 %v290
    %342 = vmatprep.subr.bf16.mxu0 %v289
    %343 = vmatpush2.bf16.msra.mxu0 %v288
    %344 = vmatprep.subr.bf16.mxu0 %v287
    %345 = vmatpush2.bf16.msra.mxu0 %v286
    %346 = vmatprep.subr.bf16.mxu0 %v285
    %347 = vmatpush2.bf16.msra.mxu0 %v284
    %348 = vmatprep.subr.bf16.mxu0 %v283
    %349 = vmatpush2.bf16.msra.mxu0 %v282
    %350 = vmatprep.subr.bf16.mxu0 %v281
    %351 = vmatpush2.bf16.msra.mxu0 %v280
    %352 = vmatprep.subr.bf16.mxu0 %v279
    %353 = vmatpush2.bf16.msra.mxu0 %v278
    %354 = vmatprep.subr.bf16.mxu0 %v277
    %355 = vmatpush2.bf16.msra.mxu0 %v276
    %356 = vmatprep.mubr.bf16.mxu0 %v99
    %357 = vmatmul.mubr.bf16.gmra.mxu0 %v98
    %v358 = vpop.f32.mrf.mxu0
    %v359 = vadd.f32 0.0, %v358
    %v360 = vpop.f32.mrf.mxu0
    %v361 = vadd.f32 0.0, %v360
    %v362 = vpop.f32.mrf.mxu0
    %v363 = vpop.f32.mrf.mxu0
    %364 = vdwg.mxu0
    %365 = vmatprep.subr.bf16.mxu0 %v275
    %366 = vmatpush1.bf16.msra.mxu0 %v274
    %367 = vmatprep.subr.bf16.mxu0 %v273
    %368 = vmatpush1.bf16.msra.mxu0 %v272
    %369 = vmatprep.subr.bf16.mxu0 %v271
    %370 = vmatpush1.bf16.msra.mxu0 %v270
    %371 = vmatprep.subr.bf16.mxu0 %v269
    %372 = vmatpush1.bf16.msra.mxu0 %v268
    %373 = vmatprep.subr.bf16.mxu0 %v267
    %374 = vmatpush1.bf16.msra.mxu0 %v266
    %375 = vmatprep.subr.bf16.mxu0 %v265
    %376 = vmatpush1.bf16.msra.mxu0 %v264
    %377 = vmatprep.subr.bf16.mxu0 %v263
    %378 = vmatpush1.bf16.msra.mxu0 %v262
    %379 = vmatprep.subr.bf16.mxu0 %v261
    %380 = vmatpush1.bf16.msra.mxu0 %v260
    %381 = vmatprep.subr.bf16.mxu0 %v291
    %382 = vmatpush2.bf16.msra.mxu0 %v290
    %383 = vmatprep.subr.bf16.mxu0 %v289
    %384 = vmatpush2.bf16.msra.mxu0 %v288
    %385 = vmatprep.subr.bf16.mxu0 %v287
    %386 = vmatpush2.bf16.msra.mxu0 %v286
    %387 = vmatprep.subr.bf16.mxu0 %v285
    %388 = vmatpush2.bf16.msra.mxu0 %v284
    %389 = vmatprep.subr.bf16.mxu0 %v283
    %390 = vmatpush2.bf16.msra.mxu0 %v282
    %391 = vmatprep.subr.bf16.mxu0 %v281
    %392 = vmatpush2.bf16.msra.mxu0 %v280
    %393 = vmatprep.subr.bf16.mxu0 %v279
    %394 = vmatpush2.bf16.msra.mxu0 %v278
    %395 = vmatprep.subr.bf16.mxu0 %v277
    %396 = vmatpush2.bf16.msra.mxu0 %v276
    %397 = vmatprep.mubr.bf16.mxu0 %v93
    %398 = vmatmul.mubr.bf16.gmra.mxu0 %v92
    %v399 = vpop.f32.mrf.mxu0
    %v400 = vadd.f32 %v359, %v399
    %v401 = vpop.f32.mrf.mxu0
    %v402 = vadd.f32 %v361, %v401
    %v403 = vpop.f32.mrf.mxu0
    %v404 = vpop.f32.mrf.mxu0
    %405 = vdwg.mxu0
    %v438 = vunpack.c.l.b16 %v132
    %v439 = vunpack.c.h.b16 %v132
    %v440 = vunpack.c.l.b16 %v133
    %v441 = vunpack.c.h.b16 %v133
    %v442 = vunpack.c.l.b16 %v134
    %v443 = vunpack.c.h.b16 %v134
    %v444 = vunpack.c.l.b16 %v135
    %v445 = vunpack.c.h.b16 %v135
    %v446 = vunpack.c.l.b16 %v136
    %v447 = vunpack.c.h.b16 %v136
    %v448 = vunpack.c.l.b16 %v137
    %v449 = vunpack.c.h.b16 %v137
    %v450 = vunpack.c.l.b16 %v138
    %v451 = vunpack.c.h.b16 %v138
    %v452 = vunpack.c.l.b16 %v139
    %v453 = vunpack.c.h.b16 %v139
    %v454 = vunpack.c.l.b16 %v140
    %v455 = vunpack.c.h.b16 %v140
    %v456 = vunpack.c.l.b16 %v141
    %v457 = vunpack.c.h.b16 %v141
    %v458 = vunpack.c.l.b16 %v142
    %v459 = vunpack.c.h.b16 %v142
    %v460 = vunpack.c.l.b16 %v143
    %v461 = vunpack.c.h.b16 %v143
    %v462 = vunpack.c.l.b16 %v144
    %v463 = vunpack.c.h.b16 %v144
    %v464 = vunpack.c.l.b16 %v145
    %v465 = vunpack.c.h.b16 %v145
    %v466 = vunpack.c.l.b16 %v146
    %v467 = vunpack.c.h.b16 %v146
    %v468 = vunpack.c.l.b16 %v147
    %v469 = vunpack.c.h.b16 %v147
    %v470 = vunpack.c.l.b16 %v148
    %v471 = vunpack.c.h.b16 %v148
    %v472 = vunpack.c.l.b16 %v149
    %v473 = vunpack.c.h.b16 %v149
    %v474 = vunpack.c.l.b16 %v150
    %v475 = vunpack.c.h.b16 %v150
    %v476 = vunpack.c.l.b16 %v151
    %v477 = vunpack.c.h.b16 %v151
    %v478 = vunpack.c.l.b16 %v152
    %v479 = vunpack.c.h.b16 %v152
    %v480 = vunpack.c.l.b16 %v153
    %v481 = vunpack.c.h.b16 %v153
    %v482 = vunpack.c.l.b16 %v154
    %v483 = vunpack.c.h.b16 %v154
    %v484 = vunpack.c.l.b16 %v155
    %v485 = vunpack.c.h.b16 %v155
    %v486 = vunpack.c.l.b16 %v156
    %v487 = vunpack.c.h.b16 %v156
    %v488 = vunpack.c.l.b16 %v157
    %v489 = vunpack.c.h.b16 %v157
    %v490 = vunpack.c.l.b16 %v158
    %v491 = vunpack.c.h.b16 %v158
    %v492 = vunpack.c.l.b16 %v159
    %v493 = vunpack.c.h.b16 %v159
    %v494 = vunpack.c.l.b16 %v160
    %v495 = vunpack.c.h.b16 %v160
    %v496 = vunpack.c.l.b16 %v161
    %v497 = vunpack.c.h.b16 %v161
    %v498 = vunpack.c.l.b16 %v162
    %v499 = vunpack.c.h.b16 %v162
    %v500 = vunpack.c.l.b16 %v163
    %v501 = vunpack.c.h.b16 %v163
    %v502 = vpack.c.b16 %v440, %v438
    %v503 = vpack.c.b16 %v441, %v439
    %v504 = vpack.c.b16 %v444, %v442
    %v505 = vpack.c.b16 %v445, %v443
    %v506 = vpack.c.b16 %v448, %v446
    %v507 = vpack.c.b16 %v449, %v447
    %v508 = vpack.c.b16 %v452, %v450
    %v509 = vpack.c.b16 %v453, %v451
    %v510 = vpack.c.b16 %v456, %v454
    %v511 = vpack.c.b16 %v457, %v455
    %v512 = vpack.c.b16 %v460, %v458
    %v513 = vpack.c.b16 %v461, %v459
    %v514 = vpack.c.b16 %v464, %v462
    %v515 = vpack.c.b16 %v465, %v463
    %v516 = vpack.c.b16 %v468, %v466
    %v517 = vpack.c.b16 %v469, %v467
    %v518 = vpack.c.b16 %v472, %v470
    %v519 = vpack.c.b16 %v473, %v471
    %v520 = vpack.c.b16 %v476, %v474
    %v521 = vpack.c.b16 %v477, %v475
    %v522 = vpack.c.b16 %v480, %v478
    %v523 = vpack.c.b16 %v481, %v479
    %v524 = vpack.c.b16 %v484, %v482
    %v525 = vpack.c.b16 %v485, %v483
    %v526 = vpack.c.b16 %v488, %v486
    %v527 = vpack.c.b16 %v489, %v487
    %v528 = vpack.c.b16 %v492, %v490
    %v529 = vpack.c.b16 %v493, %v491
    %v530 = vpack.c.b16 %v496, %v494
    %v531 = vpack.c.b16 %v497, %v495
    %v532 = vpack.c.b16 %v500, %v498
    %v533 = vpack.c.b16 %v501, %v499
    %566 = vmatprep.subr.bf16.mxu0 %v517
    %567 = vmatpush1.bf16.msra.mxu0 %v516
    %568 = vmatprep.subr.bf16.mxu0 %v515
    %569 = vmatpush1.bf16.msra.mxu0 %v514
    %570 = vmatprep.subr.bf16.mxu0 %v513
    %571 = vmatpush1.bf16.msra.mxu0 %v512
    %572 = vmatprep.subr.bf16.mxu0 %v511
    %573 = vmatpush1.bf16.msra.mxu0 %v510
    %574 = vmatprep.subr.bf16.mxu0 %v509
    %575 = vmatpush1.bf16.msra.mxu0 %v508
    %576 = vmatprep.subr.bf16.mxu0 %v507
    %577 = vmatpush1.bf16.msra.mxu0 %v506
    %578 = vmatprep.subr.bf16.mxu0 %v505
    %579 = vmatpush1.bf16.msra.mxu0 %v504
    %580 = vmatprep.subr.bf16.mxu0 %v503
    %581 = vmatpush1.bf16.msra.mxu0 %v502
    %582 = vmatprep.subr.bf16.mxu0 %v533
    %583 = vmatpush2.bf16.msra.mxu0 %v532
    %584 = vmatprep.subr.bf16.mxu0 %v531
    %585 = vmatpush2.bf16.msra.mxu0 %v530
    %586 = vmatprep.subr.bf16.mxu0 %v529
    %587 = vmatpush2.bf16.msra.mxu0 %v528
    %588 = vmatprep.subr.bf16.mxu0 %v527
    %589 = vmatpush2.bf16.msra.mxu0 %v526
    %590 = vmatprep.subr.bf16.mxu0 %v525
    %591 = vmatpush2.bf16.msra.mxu0 %v524
    %592 = vmatprep.subr.bf16.mxu0 %v523
    %593 = vmatpush2.bf16.msra.mxu0 %v522
    %594 = vmatprep.subr.bf16.mxu0 %v521
    %595 = vmatpush2.bf16.msra.mxu0 %v520
    %596 = vmatprep.subr.bf16.mxu0 %v519
    %597 = vmatpush2.bf16.msra.mxu0 %v518
    %598 = vmatprep.mubr.bf16.mxu0 %v93
    %599 = vmatmul.mubr.bf16.gmra.mxu0 %v92
    %v600 = vpop.f32.mrf.mxu0
    %v601 = vadd.f32 0.0, %v600
    %v602 = vpop.f32.mrf.mxu0
    %v603 = vadd.f32 0.0, %v602
    %v604 = vpop.f32.mrf.mxu0
    %v605 = vpop.f32.mrf.mxu0
    %606 = vdwg.mxu0
    %v607 = vadd.f32 %v400, %v601
    %v608 = vadd.f32 %v402, %v603
    %609 = vst [vmem:[#allocation11] sm:$0xff] %v607
    %610 = vst [vmem:[#allocation11 + $0x8] sm:$0xff] %v608
    %v611 = vld [vmem:[#allocation8] sm:$0xff]
    %v612 = vld [vmem:[#allocation8 + $0x8] sm:$0xff]
    %v613 = vld [vmem:[#allocation8 + $0x10] sm:$0xff]
    %v614 = vld [vmem:[#allocation8 + $0x18] sm:$0xff]
    %v615 = vld [vmem:[#allocation8 + $0x20] sm:$0xff]
    %v616 = vld [vmem:[#allocation8 + $0x28] sm:$0xff]
    %v617 = vld [vmem:[#allocation8 + $0x30] sm:$0xff]
    %v618 = vld [vmem:[#allocation8 + $0x38] sm:$0xff]
    %v619 = vld [vmem:[#allocation8 + $0x40] sm:$0xff]
    %v620 = vld [vmem:[#allocation8 + $0x48] sm:$0xff]
    %v621 = vld [vmem:[#allocation8 + $0x50] sm:$0xff]
    %v622 = vld [vmem:[#allocation8 + $0x58] sm:$0xff]
    %v623 = vld [vmem:[#allocation8 + $0x60] sm:$0xff]
    %v624 = vld [vmem:[#allocation8 + $0x68] sm:$0xff]
    %v625 = vld [vmem:[#allocation8 + $0x70] sm:$0xff]
    %v626 = vld [vmem:[#allocation8 + $0x78] sm:$0xff]
    %v627 = vld [vmem:[#allocation8 + $0x80] sm:$0xff]
    %v628 = vld [vmem:[#allocation8 + $0x88] sm:$0xff]
    %v629 = vld [vmem:[#allocation8 + $0x90] sm:$0xff]
    %v630 = vld [vmem:[#allocation8 + $0x98] sm:$0xff]
    %v631 = vld [vmem:[#allocation8 + $0xa0] sm:$0xff]
    %v632 = vld [vmem:[#allocation8 + $0xa8] sm:$0xff]
    %v633 = vld [vmem:[#allocation8 + $0xb0] sm:$0xff]
    %v634 = vld [vmem:[#allocation8 + $0xb8] sm:$0xff]
    %v635 = vld [vmem:[#allocation8 + $0xc0] sm:$0xff]
    %v636 = vld [vmem:[#allocation8 + $0xc8] sm:$0xff]
    %v637 = vld [vmem:[#allocation8 + $0xd0] sm:$0xff]
    %v638 = vld [vmem:[#allocation8 + $0xd8] sm:$0xff]
    %v639 = vld [vmem:[#allocation8 + $0xe0] sm:$0xff]
    %v640 = vld [vmem:[#allocation8 + $0xe8] sm:$0xff]
    %v641 = vld [vmem:[#allocation8 + $0xf0] sm:$0xff]
    %v642 = vld [vmem:[#allocation8 + $0xf8] sm:$0xff]
    %v643 = vld [vmem:[#allocation10] sm:$0xff]
    %v644 = vld [vmem:[#allocation10 + $0x8] sm:$0xff]
    %v645 = vld [vmem:[#allocation10 + $0x10] sm:$0xff]
    %v646 = vld [vmem:[#allocation10 + $0x18] sm:$0xff]
    %v647 = vld [vmem:[#allocation10 + $0x20] sm:$0xff]
    %v648 = vld [vmem:[#allocation10 + $0x28] sm:$0xff]
    %v649 = vld [vmem:[#allocation10 + $0x30] sm:$0xff]
    %v650 = vld [vmem:[#allocation10 + $0x38] sm:$0xff]
    %v651 = vld [vmem:[#allocation10 + $0x40] sm:$0xff]
    %v652 = vld [vmem:[#allocation10 + $0x48] sm:$0xff]
    %v653 = vld [vmem:[#allocation10 + $0x50] sm:$0xff]
    %v654 = vld [vmem:[#allocation10 + $0x58] sm:$0xff]
    %v655 = vld [vmem:[#allocation10 + $0x60] sm:$0xff]
    %v656 = vld [vmem:[#allocation10 + $0x68] sm:$0xff]
    %v657 = vld [vmem:[#allocation10 + $0x70] sm:$0xff]
    %v658 = vld [vmem:[#allocation10 + $0x78] sm:$0xff]
    %v659 = vld [vmem:[#allocation10 + $0x80] sm:$0xff]
    %v660 = vld [vmem:[#allocation10 + $0x88] sm:$0xff]
    %v661 = vld [vmem:[#allocation10 + $0x90] sm:$0xff]
    %v662 = vld [vmem:[#allocation10 + $0x98] sm:$0xff]
    %v663 = vld [vmem:[#allocation10 + $0xa0] sm:$0xff]
    %v664 = vld [vmem:[#allocation10 + $0xa8] sm:$0xff]
    %v665 = vld [vmem:[#allocation10 + $0xb0] sm:$0xff]
    %v666 = vld [vmem:[#allocation10 + $0xb8] sm:$0xff]
    %v667 = vld [vmem:[#allocation10 + $0xc0] sm:$0xff]
    %v668 = vld [vmem:[#allocation10 + $0xc8] sm:$0xff]
    %v669 = vld [vmem:[#allocation10 + $0xd0] sm:$0xff]
    %v670 = vld [vmem:[#allocation10 + $0xd8] sm:$0xff]
    %v671 = vld [vmem:[#allocation10 + $0xe0] sm:$0xff]
    %v672 = vld [vmem:[#allocation10 + $0xe8] sm:$0xff]
    %v673 = vld [vmem:[#allocation10 + $0xf0] sm:$0xff]
    %v674 = vld [vmem:[#allocation10 + $0xf8] sm:$0xff]
    %v707 = vunpack.c.l.b16 %v611
    %v708 = vunpack.c.h.b16 %v611
    %v709 = vunpack.c.l.b16 %v612
    %v710 = vunpack.c.h.b16 %v612
    %v711 = vunpack.c.l.b16 %v613
    %v712 = vunpack.c.h.b16 %v613
    %v713 = vunpack.c.l.b16 %v614
    %v714 = vunpack.c.h.b16 %v614
    %v715 = vunpack.c.l.b16 %v615
    %v716 = vunpack.c.h.b16 %v615
    %v717 = vunpack.c.l.b16 %v616
    %v718 = vunpack.c.h.b16 %v616
    %v719 = vunpack.c.l.b16 %v617
    %v720 = vunpack.c.h.b16 %v617
    %v721 = vunpack.c.l.b16 %v618
    %v722 = vunpack.c.h.b16 %v618
    %v723 = vunpack.c.l.b16 %v619
    %v724 = vunpack.c.h.b16 %v619
    %v725 = vunpack.c.l.b16 %v620
    %v726 = vunpack.c.h.b16 %v620
    %v727 = vunpack.c.l.b16 %v621
    %v728 = vunpack.c.h.b16 %v621
    %v729 = vunpack.c.l.b16 %v622
    %v730 = vunpack.c.h.b16 %v622
    %v731 = vunpack.c.l.b16 %v623
    %v732 = vunpack.c.h.b16 %v623
    %v733 = vunpack.c.l.b16 %v624
    %v734 = vunpack.c.h.b16 %v624
    %v735 = vunpack.c.l.b16 %v625
    %v736 = vunpack.c.h.b16 %v625
    %v737 = vunpack.c.l.b16 %v626
    %v738 = vunpack.c.h.b16 %v626
    %v739 = vunpack.c.l.b16 %v627
    %v740 = vunpack.c.h.b16 %v627
    %v741 = vunpack.c.l.b16 %v628
    %v742 = vunpack.c.h.b16 %v628
    %v743 = vunpack.c.l.b16 %v629
    %v744 = vunpack.c.h.b16 %v629
    %v745 = vunpack.c.l.b16 %v630
    %v746 = vunpack.c.h.b16 %v630
    %v747 = vunpack.c.l.b16 %v631
    %v748 = vunpack.c.h.b16 %v631
    %v749 = vunpack.c.l.b16 %v632
    %v750 = vunpack.c.h.b16 %v632
    %v751 = vunpack.c.l.b16 %v633
    %v752 = vunpack.c.h.b16 %v633
    %v753 = vunpack.c.l.b16 %v634
    %v754 = vunpack.c.h.b16 %v634
    %v755 = vunpack.c.l.b16 %v635
    %v756 = vunpack.c.h.b16 %v635
    %v757 = vunpack.c.l.b16 %v636
    %v758 = vunpack.c.h.b16 %v636
    %v759 = vunpack.c.l.b16 %v637
    %v760 = vunpack.c.h.b16 %v637
    %v761 = vunpack.c.l.b16 %v638
    %v762 = vunpack.c.h.b16 %v638
    %v763 = vunpack.c.l.b16 %v639
    %v764 = vunpack.c.h.b16 %v639
    %v765 = vunpack.c.l.b16 %v640
    %v766 = vunpack.c.h.b16 %v640
    %v767 = vunpack.c.l.b16 %v641
    %v768 = vunpack.c.h.b16 %v641
    %v769 = vunpack.c.l.b16 %v642
    %v770 = vunpack.c.h.b16 %v642
    %v771 = vpack.c.b16 %v709, %v707
    %v772 = vpack.c.b16 %v710, %v708
    %v773 = vpack.c.b16 %v713, %v711
    %v774 = vpack.c.b16 %v714, %v712
    %v775 = vpack.c.b16 %v717, %v715
    %v776 = vpack.c.b16 %v718, %v716
    %v777 = vpack.c.b16 %v721, %v719
    %v778 = vpack.c.b16 %v722, %v720
    %v779 = vpack.c.b16 %v725, %v723
    %v780 = vpack.c.b16 %v726, %v724
    %v781 = vpack.c.b16 %v729, %v727
    %v782 = vpack.c.b16 %v730, %v728
    %v783 = vpack.c.b16 %v733, %v731
    %v784 = vpack.c.b16 %v734, %v732
    %v785 = vpack.c.b16 %v737, %v735
    %v786 = vpack.c.b16 %v738, %v736
    %v787 = vpack.c.b16 %v741, %v739
    %v788 = vpack.c.b16 %v742, %v740
    %v789 = vpack.c.b16 %v745, %v743
    %v790 = vpack.c.b16 %v746, %v744
    %v791 = vpack.c.b16 %v749, %v747
    %v792 = vpack.c.b16 %v750, %v748
    %v793 = vpack.c.b16 %v753, %v751
    %v794 = vpack.c.b16 %v754, %v752
    %v795 = vpack.c.b16 %v757, %v755
    %v796 = vpack.c.b16 %v758, %v756
    %v797 = vpack.c.b16 %v761, %v759
    %v798 = vpack.c.b16 %v762, %v760
    %v799 = vpack.c.b16 %v765, %v763
    %v800 = vpack.c.b16 %v766, %v764
    %v801 = vpack.c.b16 %v769, %v767
    %v802 = vpack.c.b16 %v770, %v768
    %835 = vmatprep.subr.bf16.mxu0 %v786
    %836 = vmatpush1.bf16.msra.mxu0 %v785
    %837 = vmatprep.subr.bf16.mxu0 %v784
    %838 = vmatpush1.bf16.msra.mxu0 %v783
    %839 = vmatprep.subr.bf16.mxu0 %v782
    %840 = vmatpush1.bf16.msra.mxu0 %v781
    %841 = vmatprep.subr.bf16.mxu0 %v780
    %842 = vmatpush1.bf16.msra.mxu0 %v779
    %843 = vmatprep.subr.bf16.mxu0 %v778
    %844 = vmatpush1.bf16.msra.mxu0 %v777
    %845 = vmatprep.subr.bf16.mxu0 %v776
    %846 = vmatpush1.bf16.msra.mxu0 %v775
    %847 = vmatprep.subr.bf16.mxu0 %v774
    %848 = vmatpush1.bf16.msra.mxu0 %v773
    %849 = vmatprep.subr.bf16.mxu0 %v772
    %850 = vmatpush1.bf16.msra.mxu0 %v771
    %851 = vmatprep.subr.bf16.mxu0 %v802
    %852 = vmatpush2.bf16.msra.mxu0 %v801
    %853 = vmatprep.subr.bf16.mxu0 %v800
    %854 = vmatpush2.bf16.msra.mxu0 %v799
    %855 = vmatprep.subr.bf16.mxu0 %v798
    %856 = vmatpush2.bf16.msra.mxu0 %v797
    %857 = vmatprep.subr.bf16.mxu0 %v796
    %858 = vmatpush2.bf16.msra.mxu0 %v795
    %859 = vmatprep.subr.bf16.mxu0 %v794
    %860 = vmatpush2.bf16.msra.mxu0 %v793
    %861 = vmatprep.subr.bf16.mxu0 %v792
    %862 = vmatpush2.bf16.msra.mxu0 %v791
    %863 = vmatprep.subr.bf16.mxu0 %v790
    %864 = vmatpush2.bf16.msra.mxu0 %v789
    %865 = vmatprep.subr.bf16.mxu0 %v788
    %866 = vmatpush2.bf16.msra.mxu0 %v787
    %867 = vmatprep.mubr.bf16.mxu0 %v99
    %868 = vmatmul.mubr.bf16.gmra.mxu0 %v98
    %v869 = vpop.f32.mrf.mxu0
    %v870 = vadd.f32 0.0, %v869
    %v871 = vpop.f32.mrf.mxu0
    %v872 = vadd.f32 0.0, %v871
    %v873 = vpop.f32.mrf.mxu0
    %v874 = vpop.f32.mrf.mxu0
    %875 = vdwg.mxu0
    %876 = vmatprep.subr.bf16.mxu0 %v786
    %877 = vmatpush1.bf16.msra.mxu0 %v785
    %878 = vmatprep.subr.bf16.mxu0 %v784
    %879 = vmatpush1.bf16.msra.mxu0 %v783
    %880 = vmatprep.subr.bf16.mxu0 %v782
    %881 = vmatpush1.bf16.msra.mxu0 %v781
    %882 = vmatprep.subr.bf16.mxu0 %v780
    %883 = vmatpush1.bf16.msra.mxu0 %v779
    %884 = vmatprep.subr.bf16.mxu0 %v778
    %885 = vmatpush1.bf16.msra.mxu0 %v777
    %886 = vmatprep.subr.bf16.mxu0 %v776
    %887 = vmatpush1.bf16.msra.mxu0 %v775
    %888 = vmatprep.subr.bf16.mxu0 %v774
    %889 = vmatpush1.bf16.msra.mxu0 %v773
    %890 = vmatprep.subr.bf16.mxu0 %v772
    %891 = vmatpush1.bf16.msra.mxu0 %v771
    %892 = vmatprep.subr.bf16.mxu0 %v802
    %893 = vmatpush2.bf16.msra.mxu0 %v801
    %894 = vmatprep.subr.bf16.mxu0 %v800
    %895 = vmatpush2.bf16.msra.mxu0 %v799
    %896 = vmatprep.subr.bf16.mxu0 %v798
    %897 = vmatpush2.bf16.msra.mxu0 %v797
    %898 = vmatprep.subr.bf16.mxu0 %v796
    %899 = vmatpush2.bf16.msra.mxu0 %v795
    %900 = vmatprep.subr.bf16.mxu0 %v794
    %901 = vmatpush2.bf16.msra.mxu0 %v793
    %902 = vmatprep.subr.bf16.mxu0 %v792
    %903 = vmatpush2.bf16.msra.mxu0 %v791
    %904 = vmatprep.subr.bf16.mxu0 %v790
    %905 = vmatpush2.bf16.msra.mxu0 %v789
    %906 = vmatprep.subr.bf16.mxu0 %v788
    %907 = vmatpush2.bf16.msra.mxu0 %v787
    %908 = vmatprep.mubr.bf16.mxu0 %v93
    %909 = vmatmul.mubr.bf16.gmra.mxu0 %v92
    %v910 = vpop.f32.mrf.mxu0
    %v911 = vadd.f32 %v870, %v910
    %v912 = vpop.f32.mrf.mxu0
    %v913 = vadd.f32 %v872, %v912
    %v914 = vpop.f32.mrf.mxu0
    %v915 = vpop.f32.mrf.mxu0
    %916 = vdwg.mxu0
    %v949 = vunpack.c.l.b16 %v643
    %v950 = vunpack.c.h.b16 %v643
    %v951 = vunpack.c.l.b16 %v644
    %v952 = vunpack.c.h.b16 %v644
    %v953 = vunpack.c.l.b16 %v645
    %v954 = vunpack.c.h.b16 %v645
    %v955 = vunpack.c.l.b16 %v646
    %v956 = vunpack.c.h.b16 %v646
    %v957 = vunpack.c.l.b16 %v647
    %v958 = vunpack.c.h.b16 %v647
    %v959 = vunpack.c.l.b16 %v648
    %v960 = vunpack.c.h.b16 %v648
    %v961 = vunpack.c.l.b16 %v649
    %v962 = vunpack.c.h.b16 %v649
    %v963 = vunpack.c.l.b16 %v650
    %v964 = vunpack.c.h.b16 %v650
    %v965 = vunpack.c.l.b16 %v651
    %v966 = vunpack.c.h.b16 %v651
    %v967 = vunpack.c.l.b16 %v652
    %v968 = vunpack.c.h.b16 %v652
    %v969 = vunpack.c.l.b16 %v653
    %v970 = vunpack.c.h.b16 %v653
    %v971 = vunpack.c.l.b16 %v654
    %v972 = vunpack.c.h.b16 %v654
    %v973 = vunpack.c.l.b16 %v655
    %v974 = vunpack.c.h.b16 %v655
    %v975 = vunpack.c.l.b16 %v656
    %v976 = vunpack.c.h.b16 %v656
    %v977 = vunpack.c.l.b16 %v657
    %v978 = vunpack.c.h.b16 %v657
    %v979 = vunpack.c.l.b16 %v658
    %v980 = vunpack.c.h.b16 %v658
    %v981 = vunpack.c.l.b16 %v659
    %v982 = vunpack.c.h.b16 %v659
    %v983 = vunpack.c.l.b16 %v660
    %v984 = vunpack.c.h.b16 %v660
    %v985 = vunpack.c.l.b16 %v661
    %v986 = vunpack.c.h.b16 %v661
    %v987 = vunpack.c.l.b16 %v662
    %v988 = vunpack.c.h.b16 %v662
    %v989 = vunpack.c.l.b16 %v663
    %v990 = vunpack.c.h.b16 %v663
    %v991 = vunpack.c.l.b16 %v664
    %v992 = vunpack.c.h.b16 %v664
    %v993 = vunpack.c.l.b16 %v665
    %v994 = vunpack.c.h.b16 %v665
    %v995 = vunpack.c.l.b16 %v666
    %v996 = vunpack.c.h.b16 %v666
    %v997 = vunpack.c.l.b16 %v667
    %v998 = vunpack.c.h.b16 %v667
    %v999 = vunpack.c.l.b16 %v668
    %v1000 = vunpack.c.h.b16 %v668
    %v1001 = vunpack.c.l.b16 %v669
    %v1002 = vunpack.c.h.b16 %v669
    %v1003 = vunpack.c.l.b16 %v670
    %v1004 = vunpack.c.h.b16 %v670
    %v1005 = vunpack.c.l.b16 %v671
    %v1006 = vunpack.c.h.b16 %v671
    %v1007 = vunpack.c.l.b16 %v672
    %v1008 = vunpack.c.h.b16 %v672
    %v1009 = vunpack.c.l.b16 %v673
    %v1010 = vunpack.c.h.b16 %v673
    %v1011 = vunpack.c.l.b16 %v674
    %v1012 = vunpack.c.h.b16 %v674
    %v1013 = vpack.c.b16 %v951, %v949
    %v1014 = vpack.c.b16 %v952, %v950
    %v1015 = vpack.c.b16 %v955, %v953
    %v1016 = vpack.c.b16 %v956, %v954
    %v1017 = vpack.c.b16 %v959, %v957
    %v1018 = vpack.c.b16 %v960, %v958
    %v1019 = vpack.c.b16 %v963, %v961
    %v1020 = vpack.c.b16 %v964, %v962
    %v1021 = vpack.c.b16 %v967, %v965
    %v1022 = vpack.c.b16 %v968, %v966
    %v1023 = vpack.c.b16 %v971, %v969
    %v1024 = vpack.c.b16 %v972, %v970
    %v1025 = vpack.c.b16 %v975, %v973
    %v1026 = vpack.c.b16 %v976, %v974
    %v1027 = vpack.c.b16 %v979, %v977
    %v1028 = vpack.c.b16 %v980, %v978
    %v1029 = vpack.c.b16 %v983, %v981
    %v1030 = vpack.c.b16 %v984, %v982
    %v1031 = vpack.c.b16 %v987, %v985
    %v1032 = vpack.c.b16 %v988, %v986
    %v1033 = vpack.c.b16 %v991, %v989
    %v1034 = vpack.c.b16 %v992, %v990
    %v1035 = vpack.c.b16 %v995, %v993
    %v1036 = vpack.c.b16 %v996, %v994
    %v1037 = vpack.c.b16 %v999, %v997
    %v1038 = vpack.c.b16 %v1000, %v998
    %v1039 = vpack.c.b16 %v1003, %v1001
    %v1040 = vpack.c.b16 %v1004, %v1002
    %v1041 = vpack.c.b16 %v1007, %v1005
    %v1042 = vpack.c.b16 %v1008, %v1006
    %v1043 = vpack.c.b16 %v1011, %v1009
    %v1044 = vpack.c.b16 %v1012, %v1010
    %1077 = vmatprep.subr.bf16.mxu0 %v1028
    %1078 = vmatpush1.bf16.msra.mxu0 %v1027
    %1079 = vmatprep.subr.bf16.mxu0 %v1026
    %1080 = vmatpush1.bf16.msra.mxu0 %v1025
    %1081 = vmatprep.subr.bf16.mxu0 %v1024
    %1082 = vmatpush1.bf16.msra.mxu0 %v1023
    %1083 = vmatprep.subr.bf16.mxu0 %v1022
    %1084 = vmatpush1.bf16.msra.mxu0 %v1021
    %1085 = vmatprep.subr.bf16.mxu0 %v1020
    %1086 = vmatpush1.bf16.msra.mxu0 %v1019
    %1087 = vmatprep.subr.bf16.mxu0 %v1018
    %1088 = vmatpush1.bf16.msra.mxu0 %v1017
    %1089 = vmatprep.subr.bf16.mxu0 %v1016
    %1090 = vmatpush1.bf16.msra.mxu0 %v1015
    %1091 = vmatprep.subr.bf16.mxu0 %v1014
    %1092 = vmatpush1.bf16.msra.mxu0 %v1013
    %1093 = vmatprep.subr.bf16.mxu0 %v1044
    %1094 = vmatpush2.bf16.msra.mxu0 %v1043
    %1095 = vmatprep.subr.bf16.mxu0 %v1042
    %1096 = vmatpush2.bf16.msra.mxu0 %v1041
    %1097 = vmatprep.subr.bf16.mxu0 %v1040
    %1098 = vmatpush2.bf16.msra.mxu0 %v1039
    %1099 = vmatprep.subr.bf16.mxu0 %v1038
    %1100 = vmatpush2.bf16.msra.mxu0 %v1037
    %1101 = vmatprep.subr.bf16.mxu0 %v1036
    %1102 = vmatpush2.bf16.msra.mxu0 %v1035
    %1103 = vmatprep.subr.bf16.mxu0 %v1034
    %1104 = vmatpush2.bf16.msra.mxu0 %v1033
    %1105 = vmatprep.subr.bf16.mxu0 %v1032
    %1106 = vmatpush2.bf16.msra.mxu0 %v1031
    %1107 = vmatprep.subr.bf16.mxu0 %v1030
    %1108 = vmatpush2.bf16.msra.mxu0 %v1029
    %1109 = vmatprep.mubr.bf16.mxu0 %v93
    %1110 = vmatmul.mubr.bf16.gmra.mxu0 %v92
    %v1111 = vpop.f32.mrf.mxu0
    %v1112 = vadd.f32 0.0, %v1111
    %v1113 = vpop.f32.mrf.mxu0
    %v1114 = vadd.f32 0.0, %v1113
    %v1115 = vpop.f32.mrf.mxu0
    %v1116 = vpop.f32.mrf.mxu0
    %1117 = vdwg.mxu0
    %v1118 = vadd.f32 %v911, %v1112
    %v1119 = vadd.f32 %v913, %v1114
    %1120 = vst [vmem:[#allocation12] sm:$0xff] %v1118
    %1121 = vst [vmem:[#allocation12 + $0x8] sm:$0xff] %v1119
    // Predicated region
    $region42: #{tpu_custom_call.1} parent=1 // pred_check
      _
    $region43: #{tpu_custom_call.1} parent=1 // pred_check_branch
      %1123 = sbr.rel (0) target = $region45
    $region44: #{tpu_custom_call.1} parent=1 // pred_region
      %s1125 = ssub.s32 256, 256
      %1126 = vsyncadd [#allocation4], %s1125
      %s1128 = sshll.u32 [#allocation11], 4
      %s1129 = int_to_ptr.vmem [resolvable:$true] %s1128
      %1131 = dma.vmem_to_hbm [thread:$0]  %s1129, 256, %s5, [#allocation4]
    $region45: #{tpu_custom_call.1} parent=1 // pred_fallthru
      _
    // Predicated region
    $region46: #{tpu_custom_call.1} parent=1 // pred_check
      _
    $region47: #{tpu_custom_call.1} parent=1 // pred_check_branch
      %1133 = sbr.rel (0) target = $region49
    $region48: #{tpu_custom_call.1} parent=1 // pred_region
      %s1135 = ssub.s32 256, 256
      %1136 = vsyncadd [#allocation13], %s1135
      %s1138 = sshll.u32 [#allocation12], 4
      %s1139 = int_to_ptr.vmem [resolvable:$true] %s1138
      %1141 = dma.vmem_to_hbm [thread:$0]  %s1139, 256, %s6, [#allocation13]
    $region49: #{tpu_custom_call.1} parent=1 // pred_fallthru
      _
    // Predicated region
    $region50: #{tpu_custom_call.1} parent=1 // pred_check
      _
    $region51: #{tpu_custom_call.1} parent=1 // pred_check_branch
      %1143 = sbr.rel (0) target = $region53
    $region52: #{tpu_custom_call.1} parent=1 // pred_region
      %1144 = dma.done [#allocation4], 256
    $region53: #{tpu_custom_call.1} parent=1 // pred_fallthru
      _
    // Predicated region
    $region54: #{tpu_custom_call.1} parent=1 // pred_check
      _
    $region55: #{tpu_custom_call.1} parent=1 // pred_check_branch
      %1146 = sbr.rel (0) target = $region57
    $region56: #{tpu_custom_call.1} parent=1 // pred_region
      %1147 = dma.done [#allocation13], 256
    $region57: #{tpu_custom_call.1} parent=1 // pred_fallthru
      _
    %1148 = vsyncpa [#allocation3], 1
    %1149 = vsyncpa [#allocation6], 1
    %1150 = vsyncpa [#allocation9], 1
    %1151 = vsyncpa [#allocation4], 1
    %1152 = vsyncpa [#allocation13], 1

</llo_original>
